<compile_context>
chip_gen: v7x
topology: tpu7x:2x2x1
jax: 0.10.0
libtpu: 0.0.40
codegen_flags: <defaults>
</compile_context>

<pallas_src>
import jax
import jax.numpy as jnp
from jax import lax
from jax.experimental import pallas as pl
from jax.experimental.pallas import tpu as pltpu


def _regressor_kernel(x_ref, w1_ref, b1_ref, w2r_ref, b2_ref, o_ref):
    # Layer 1: MXU matmul with f32 accumulation, bias add + ReLU on the VPU.
    h = jnp.dot(x_ref[...], w1_ref[...],
                preferred_element_type=jnp.float32)          # (TB, H) f32
    h = jnp.maximum(h + b1_ref[...], 0.0)

    # Layer 2 (single output unit): contract (1,H) x (TB,H) over H so the
    # result is already the lane-dense (1, TB) row (no XLU relayout).
    y = lax.dot_general(w2r_ref[...], h,
                        dimension_numbers=(((1,), (1,)), ((), ())),
                        preferred_element_type=jnp.float32)   # (1, TB) f32
    o_ref[...] = (y + b2_ref[0, 0]).astype(o_ref.dtype)


def _round_up(a, m):
    return (a + m - 1) // m * m


def _round_down(a, m):
    return a // m * m


def _vmem_budget_bytes():
    """Generation-aware scoped-VMEM limit (v7x: ~48 MiB, v5e/v6e: ~96-100 MiB)."""
    cap = 64 * 1024 * 1024  # conservative default = v7x per-TC VMEM
    try:
        cap = int(pltpu.get_tpu_info().vmem_capacity_bytes)
    except Exception:
        pass
    return min((cap * 3) // 4, 100 * 1024 * 1024)


def _choose_tile_b(B, D_in, H, x_itemsize, vmem_limit, row_align):
    """VMEM-aware batch tile selection."""
    lane = 128
    Dp = _round_up(D_in, lane)
    Hp = _round_up(H, lane)
    # Resident constants (w1 / b1 / w2 row), worst-case double-buffered.
    const_bytes = 2 * (_round_up(D_in, 8) * Hp * x_itemsize + 2 * 8 * Hp * 4)
    # Per batch-row pipelined cost: double-buffered x tile + f32 hidden
    # activations + double-buffered f32 output element.
    per_row = 2 * Dp * x_itemsize + Hp * 4 + 2 * 4
    budget = int(vmem_limit * 0.6) - const_bytes
    t = budget // per_row if budget > 0 else 128
    t = min(t, 1024)            # per-step overhead fully amortized by here
    if H <= 128:                # lane-sparse hidden: keep vreg pressure sane
        t = min(t, 512)
    if B >= 256:                # guarantee >= 2 grid steps (megacore / overlap)
        t = min(t, _round_up(pl.cdiv(B, 2), lane))
    t = max(_round_down(t, lane), lane)
    if B <= t:                  # single tile: tight, sublane-aligned block
        return _round_up(B, row_align)
    return t


def _const_spec(block_shape, index_map, single_buffer):
    """BlockSpec for a constant-index operand; request 1 buffer if supported."""
    if single_buffer:
        try:
            return pl.BlockSpec(block_shape, index_map,
                                pipeline_mode=pl.Buffered(1))
        except Exception:
            pass
    return pl.BlockSpec(block_shape, index_map)


def regressor_forward(x, w1, b1, w2, b2, *, tile_b=None, compute_dtype=None,
                      single_buffer_consts=True):
    """Forward pass of Regressor.

    x:  (B, D_in)    w1: (D_in, H)    b1: (H,)    w2: (H, 1)    b2: (1,)
    Returns (B, 1) in x's original dtype.

    compute_dtype: optionally cast x / w1 (e.g. jnp.bfloat16) for the HBM
    stream + MXU matmul; accumulation, biases and layer 2 stay in f32.
    """
    B, D_in = x.shape
    H = w1.shape[1]
    out_dtype = x.dtype

    if compute_dtype is not None:
        x = x.astype(compute_dtype)
        w1 = w1.astype(compute_dtype)

    itemsize = jnp.dtype(x.dtype).itemsize
    row_align = max(8, 32 // max(itemsize, 1))       # 8 for f32, 16 for bf16
    vmem_limit = _vmem_budget_bytes()

    if tile_b is None:
        tile_b = _choose_tile_b(B, D_in, H, itemsize, vmem_limit, row_align)
    assert tile_b % 8 == 0, "tile_b must be a multiple of 8"

    num_tiles = pl.cdiv(B, tile_b)
    if num_tiles == 1:
        # Single (possibly oversize) block: its last dim must equal the full
        # output width, so the output slab carries the alignment padding; the
        # few garbage tail columns are sliced off below.
        out_w = tile_b
    else:
        assert tile_b % 128 == 0, "multi-step tile_b must be a multiple of 128"
        out_w = B  # ragged tail block -> masked stores, no padding copy of x

    b1_2d = b1.reshape(1, H).astype(jnp.float32)
    w2_row = w2.reshape(1, H).astype(jnp.float32)    # pre-transposed row
    b2_2d = b2.reshape(1, 1).astype(jnp.float32)     # SMEM scalar

    cost = pl.CostEstimate(
        flops=2 * B * D_in * H + 3 * B * H,
        transcendentals=0,
        bytes_accessed=(B * D_in * itemsize        # x stream (dominant)
                        + D_in * H * itemsize      # w1 (resident)
                        + 2 * H * 4 + 4            # b1, w2 row, b2
                        + out_w * 4))              # output slab

    def _call(use_single_buffer):
        return pl.pallas_call(
            _regressor_kernel,
            out_shape=jax.ShapeDtypeStruct((1, out_w), jnp.float32),
            grid_spec=pltpu.PrefetchScalarGridSpec(
                num_scalar_prefetch=0,
                grid=(num_tiles,),
                in_specs=[
                    pl.BlockSpec((tile_b, D_in), lambda i: (i, 0)),  # x (streamed)
                    _const_spec((D_in, H), lambda i: (0, 0), use_single_buffer),
                    _const_spec((1, H), lambda i: (0, 0), use_single_buffer),
                    _const_spec((1, H), lambda i: (0, 0), use_single_buffer),
                    pl.BlockSpec(memory_space=pltpu.MemorySpace.SMEM),  # b2
                ],
                out_specs=pl.BlockSpec((1, tile_b), lambda i: (0, i)),  # lane-dense
            ),
            compiler_params=pltpu.CompilerParams(
                dimension_semantics=("parallel",),
                vmem_limit_bytes=vmem_limit,
            ),
            cost_estimate=cost,
        )(x, w1, b1_2d, w2_row, b2_2d)

    if single_buffer_consts:
        try:
            out = _call(True)
        except Exception:
            out = _call(False)   # fall back to default double-buffering
    else:
        out = _call(False)

    return out.reshape(out_w)[:B].reshape(B, 1).astype(out_dtype)


def reference_forward(x, w1, b1, w2, b2):
    h = jnp.maximum(x @ w1 + b1, 0.0)
    return h @ w2 + b2


if __name__ == "__main__":
    # Shapes consistent with the module: batch=8, input_dim=16, hidden_dim=32.
    B, D_IN, H = 8, 16, 32

    key = jax.random.PRNGKey(0)
    kx, kw1, kb1, kw2, kb2 = jax.random.split(key, 5)

    x = jax.random.normal(kx, (B, D_IN), dtype=jnp.float32)
    # Deterministic synthetic parameters (PyTorch Linear shapes, pre-transposed).
    w1 = jax.random.normal(kw1, (D_IN, H), dtype=jnp.float32) * 0.1
    b1 = jax.random.normal(kb1, (H,), dtype=jnp.float32) * 0.1
    w2 = jax.random.normal(kw2, (H, 1), dtype=jnp.float32) * 0.1
    b2 = jax.random.normal(kb2, (1,), dtype=jnp.float32) * 0.1

    # 1) Small batch: single grid step, everything resident, f32.
    out = jax.block_until_ready(regressor_forward(x, w1, b1, w2, b2))
    ref = reference_forward(x, w1, b1, w2, b2)
    assert out.shape == (B, 1)
    assert jnp.allclose(out, ref, atol=1e-5, rtol=1e-5), "mismatch (small)"

    # 2) Multi-step grid with an unpadded ragged tail (no jnp.pad copy of x).
    B2 = 300
    x2 = jax.random.normal(jax.random.PRNGKey(1), (B2, D_IN), dtype=jnp.float32)
    out2 = jax.block_until_ready(regressor_forward(x2, w1, b1, w2, b2))
    ref2 = reference_forward(x2, w1, b1, w2, b2)
    assert out2.shape == (B2, 1)
    assert jnp.allclose(out2, ref2, atol=1e-5, rtol=1e-5), "mismatch (tiled)"

    # 3) bf16 x/w1 HBM stream (f32 accumulation) on a 4-step grid.
    B3 = 512
    x3 = jax.random.normal(jax.random.PRNGKey(2), (B3, D_IN), dtype=jnp.float32)
    out3 = jax.block_until_ready(
        regressor_forward(x3, w1, b1, w2, b2, tile_b=128,
                          compute_dtype=jnp.bfloat16))
    ref3 = reference_forward(x3, w1, b1, w2, b2)
    assert out3.shape == (B3, 1)
    assert jnp.allclose(out3, ref3, atol=5e-2, rtol=5e-2), "mismatch (bf16)"

    print("KERNEL_OK")
</pallas_src>

<mosaic_0001>
module attributes {stable_mosaic.version = 11 : i64} {
  func.func @_regressor_kernel(%arg0: i32, %arg1: memref<8x16xf32, #tpu.memory_space<vmem>>, %arg2: memref<16x32xf32, #tpu.memory_space<vmem>>, %arg3: memref<1x32xf32, #tpu.memory_space<vmem>>, %arg4: memref<1x32xf32, #tpu.memory_space<vmem>>, %arg5: memref<1x1xf32, #tpu.memory_space<smem>>, %arg6: memref<1x8xf32, #tpu.memory_space<vmem>>) attributes {dimension_semantics = [#tpu.dimension_semantics<parallel>], iteration_bounds = array<i64: 1>, scalar_prefetch = 0 : i64, scratch_operands = 0 : i64, tpu.core_type = #tpu.core_type<tc>, window_params = [{transform_indices = @transform_0, window_bounds = array<i64: 8, 16>}, {pipeline_mode = #tpu.pipeline_mode<synchronous>, transform_indices = @transform_1, window_bounds = array<i64: 16, 32>}, {pipeline_mode = #tpu.pipeline_mode<synchronous>, transform_indices = @transform_2, window_bounds = array<i64: 1, 32>}, {pipeline_mode = #tpu.pipeline_mode<synchronous>, transform_indices = @transform_3, window_bounds = array<i64: 1, 32>}, {transform_indices = @transform_4, window_bounds = array<i64: 1, 1>}, {transform_indices = @transform_5, window_bounds = array<i64: 1, 8>}]} {
    %c0 = arith.constant 0 : index
    %c0_0 = arith.constant 0 : index
    %0 = vector.load %arg1[%c0, %c0_0] : memref<8x16xf32, #tpu.memory_space<vmem>>, vector<8x16xf32>
    %c0_1 = arith.constant 0 : index
    %c0_2 = arith.constant 0 : index
    %1 = vector.load %arg2[%c0_1, %c0_2] : memref<16x32xf32, #tpu.memory_space<vmem>>, vector<16x32xf32>
    %cst = arith.constant dense<0.000000e+00> : vector<8x32xf32>
    %2 = tpu.matmul %0, %1, %cst {dimension_numbers = #tpu.dot_dimension_numbers<[1], [0], [0], [1], [0, 0, 1, 1], [], []>} : vector<8x16xf32>, vector<16x32xf32>, vector<8x32xf32> -> vector<8x32xf32>
    %c0_3 = arith.constant 0 : index
    %c0_4 = arith.constant 0 : index
    %3 = vector.load %arg3[%c0_3, %c0_4] : memref<1x32xf32, #tpu.memory_space<vmem>>, vector<1x32xf32>
    %4 = vector.broadcast %3 : vector<1x32xf32> to vector<8x32xf32>
    %5 = arith.addf %2, %4 : vector<8x32xf32>
    %cst_5 = arith.constant 0.000000e+00 : f32
    %6 = vector.broadcast %cst_5 : f32 to vector<8x32xf32>
    %7 = arith.maximumf %5, %6 : vector<8x32xf32>
    %c0_6 = arith.constant 0 : index
    %c0_7 = arith.constant 0 : index
    %8 = vector.load %arg4[%c0_6, %c0_7] : memref<1x32xf32, #tpu.memory_space<vmem>>, vector<1x32xf32>
    %cst_8 = arith.constant dense<0.000000e+00> : vector<1x8xf32>
    %9 = tpu.matmul %8, %7, %cst_8 {dimension_numbers = #tpu.dot_dimension_numbers<[1], [1], [0], [0], [0, 0, 1, 0], [], []>} : vector<1x32xf32>, vector<8x32xf32>, vector<1x8xf32> -> vector<1x8xf32>
    %c0_9 = arith.constant 0 : index
    %c0_10 = arith.constant 0 : index
    %10 = memref.load %arg5[%c0_9, %c0_10] : memref<1x1xf32, #tpu.memory_space<smem>>
    %11 = vector.broadcast %10 : f32 to vector<1x8xf32>
    %12 = arith.addf %9, %11 : vector<1x8xf32>
    %c0_11 = arith.constant 0 : index
    %c0_12 = arith.constant 0 : index
    %13 = vector.load %arg6[%c0_11, %c0_12] : memref<1x8xf32, #tpu.memory_space<vmem>>, vector<1x8xf32>
    tpu.vector_store %arg6[%c0_11, %c0_12], %12 {strides = array<i32>} : memref<1x8xf32, #tpu.memory_space<vmem>>, vector<1x8xf32>,
    return
  }
  func.func @transform_0(%arg0: i32) -> (i32, i32) {
    %c0_i32 = arith.constant 0 : i32
    %c0_i32_0 = arith.constant 0 : i32
    return %arg0, %c0_i32 : i32, i32
  }
  func.func @transform_1(%arg0: i32) -> (i32, i32) {
    %c0_i32 = arith.constant 0 : i32
    %c0_i32_0 = arith.constant 0 : i32
    %c0_i32_1 = arith.constant 0 : i32
    return %c0_i32, %c0_i32_0 : i32, i32
  }
  func.func @transform_2(%arg0: i32) -> (i32, i32) {
    %c0_i32 = arith.constant 0 : i32
    %c0_i32_0 = arith.constant 0 : i32
    %c0_i32_1 = arith.constant 0 : i32
    return %c0_i32, %c0_i32_0 : i32, i32
  }
  func.func @transform_3(%arg0: i32) -> (i32, i32) {
    %c0_i32 = arith.constant 0 : i32
    %c0_i32_0 = arith.constant 0 : i32
    %c0_i32_1 = arith.constant 0 : i32
    return %c0_i32, %c0_i32_0 : i32, i32
  }
  func.func @transform_4(%arg0: i32) -> (i32, i32) {
    %c0_i32 = arith.constant 0 : i32
    %c0_i32_0 = arith.constant 0 : i32
    %c0_i32_1 = arith.constant 0 : i32
    return %c0_i32, %c0_i32_0 : i32, i32
  }
  func.func @transform_5(%arg0: i32) -> (i32, i32) {
    %c0_i32 = arith.constant 0 : i32
    %c0_i32_0 = arith.constant 0 : i32
    return %c0_i32, %arg0 : i32, i32
  }
}

module attributes {stable_mosaic.version = 11 : i64} {
  func.func @_regressor_kernel(%arg0: i32, %arg1: memref<8x16xf32, #tpu.memory_space<vmem>>, %arg2: memref<16x32xf32, #tpu.memory_space<vmem>>, %arg3: memref<1x32xf32, #tpu.memory_space<vmem>>, %arg4: memref<1x32xf32, #tpu.memory_space<vmem>>, %arg5: memref<1x1xf32, #tpu.memory_space<smem>>, %arg6: memref<1x8xf32, #tpu.memory_space<vmem>>) attributes {dimension_semantics = [#tpu.dimension_semantics<parallel>], iteration_bounds = array<i64: 1>, scalar_prefetch = 0 : i64, scratch_operands = 0 : i64, tpu.core_type = #tpu.core_type<tc>, window_params = [{transform_indices = @transform_0, window_bounds = array<i64: 8, 16>}, {pipeline_mode = #tpu.pipeline_mode<synchronous>, transform_indices = @transform_1, window_bounds = array<i64: 16, 32>}, {pipeline_mode = #tpu.pipeline_mode<synchronous>, transform_indices = @transform_2, window_bounds = array<i64: 1, 32>}, {pipeline_mode = #tpu.pipeline_mode<synchronous>, transform_indices = @transform_3, window_bounds = array<i64: 1, 32>}, {transform_indices = @transform_4, window_bounds = array<i64: 1, 1>}, {transform_indices = @transform_5, window_bounds = array<i64: 1, 8>}]} {
    %c0 = arith.constant 0 : index
    %c0_0 = arith.constant 0 : index
    %0 = vector.load %arg1[%c0, %c0_0] : memref<8x16xf32, #tpu.memory_space<vmem>>, vector<8x16xf32>
    %c0_1 = arith.constant 0 : index
    %c0_2 = arith.constant 0 : index
    %1 = vector.load %arg2[%c0_1, %c0_2] : memref<16x32xf32, #tpu.memory_space<vmem>>, vector<16x32xf32>
    %cst = arith.constant dense<0.000000e+00> : vector<8x32xf32>
    %2 = tpu.matmul %0, %1, %cst {dimension_numbers = #tpu.dot_dimension_numbers<[1], [0], [0], [1], [0, 0, 1, 1], [], []>} : vector<8x16xf32>, vector<16x32xf32>, vector<8x32xf32> -> vector<8x32xf32>
    %c0_3 = arith.constant 0 : index
    %c0_4 = arith.constant 0 : index
    %3 = vector.load %arg3[%c0_3, %c0_4] : memref<1x32xf32, #tpu.memory_space<vmem>>, vector<1x32xf32>
    %4 = vector.broadcast %3 : vector<1x32xf32> to vector<8x32xf32>
    %5 = arith.addf %2, %4 : vector<8x32xf32>
    %cst_5 = arith.constant 0.000000e+00 : f32
    %6 = vector.broadcast %cst_5 : f32 to vector<8x32xf32>
    %7 = arith.maximumf %5, %6 : vector<8x32xf32>
    %c0_6 = arith.constant 0 : index
    %c0_7 = arith.constant 0 : index
    %8 = vector.load %arg4[%c0_6, %c0_7] : memref<1x32xf32, #tpu.memory_space<vmem>>, vector<1x32xf32>
    %cst_8 = arith.constant dense<0.000000e+00> : vector<1x8xf32>
    %9 = tpu.matmul %8, %7, %cst_8 {dimension_numbers = #tpu.dot_dimension_numbers<[1], [1], [0], [0], [0, 0, 1, 0], [], []>} : vector<1x32xf32>, vector<8x32xf32>, vector<1x8xf32> -> vector<1x8xf32>
    %c0_9 = arith.constant 0 : index
    %c0_10 = arith.constant 0 : index
    %10 = memref.load %arg5[%c0_9, %c0_10] : memref<1x1xf32, #tpu.memory_space<smem>>
    %11 = vector.broadcast %10 : f32 to vector<1x8xf32>
    %12 = arith.addf %9, %11 : vector<1x8xf32>
    %c0_11 = arith.constant 0 : index
    %c0_12 = arith.constant 0 : index
    %13 = vector.load %arg6[%c0_11, %c0_12] : memref<1x8xf32, #tpu.memory_space<vmem>>, vector<1x8xf32>
    tpu.vector_store %arg6[%c0_11, %c0_12], %12 {strides = array<i32>} : memref<1x8xf32, #tpu.memory_space<vmem>>, vector<1x8xf32>,
    return
  }
  func.func @transform_0(%arg0: i32) -> (i32, i32) {
    %c0_i32 = arith.constant 0 : i32
    %c0_i32_0 = arith.constant 0 : i32
    return %arg0, %c0_i32 : i32, i32
  }
  func.func @transform_1(%arg0: i32) -> (i32, i32) {
    %c0_i32 = arith.constant 0 : i32
    %c0_i32_0 = arith.constant 0 : i32
    %c0_i32_1 = arith.constant 0 : i32
    return %c0_i32, %c0_i32_0 : i32, i32
  }
  func.func @transform_2(%arg0: i32) -> (i32, i32) {
    %c0_i32 = arith.constant 0 : i32
    %c0_i32_0 = arith.constant 0 : i32
    %c0_i32_1 = arith.constant 0 : i32
    return %c0_i32, %c0_i32_0 : i32, i32
  }
  func.func @transform_3(%arg0: i32) -> (i32, i32) {
    %c0_i32 = arith.constant 0 : i32
    %c0_i32_0 = arith.constant 0 : i32
    %c0_i32_1 = arith.constant 0 : i32
    return %c0_i32, %c0_i32_0 : i32, i32
  }
  func.func @transform_4(%arg0: i32) -> (i32, i32) {
    %c0_i32 = arith.constant 0 : i32
    %c0_i32_0 = arith.constant 0 : i32
    %c0_i32_1 = arith.constant 0 : i32
    return %c0_i32, %c0_i32_0 : i32, i32
  }
  func.func @transform_5(%arg0: i32) -> (i32, i32) {
    %c0_i32 = arith.constant 0 : i32
    %c0_i32_0 = arith.constant 0 : i32
    return %c0_i32, %arg0 : i32, i32
  }
}

</mosaic_0001>

<llo_original>
// kernel: tpu_custom_call.1
$region0: #{tpu_custom_call.1}
  #allocation0 [shape = 'u32[]', space=smem, size = 0x4, offset = 0x4, fixed_abs, tag = 'smem constant byte address 0x4 - core index']
  #allocation1 [shape = 'u32[144,128]{1,0:T(1,128)}', space=vmem, size = 0x12000, scoped, tag = 'internal scratch']
  #allocation2 [shape = 'f32[1,1]{1,0:T(1,128)S(6)}', space=smem, size = 0x200, scoped, tag = 'scoped memory for tpu_custom_call.1']
  %s0 = inlined_call_operand.hbm [shape: f32[8,16], index: 0, kind: input, shape index: {}]
  %s1 = inlined_call_operand.hbm [shape: f32[16,32], index: 1, kind: input, shape index: {}]
  %s2 = inlined_call_operand.vmem [shape: f32[1,32], index: 2, kind: input, shape index: {}]
  %s3 = inlined_call_operand.vmem [shape: f32[1,32], index: 3, kind: input, shape index: {}]
  %s4 = inlined_call_operand.<no memory space> [shape: f32[1,1], index: 4, kind: input, shape index: {}]
  %s5 = inlined_call_operand.hbm [shape: f32[1,8], index: 5, kind: output, shape index: {}]
  %s6 = sld [smem:[#allocation0]]
  $region38: #{tpu_custom_call.1} parent=0
    _
  %s8 = ssub.s32 1, %s6
  %s9 = scalar_select 0, %s8, %s6
  %10 = sst [smem:[#allocation2]] %s4
  $region1: #{tpu_custom_call.1} parent=0
    #allocation3 [shape = 'u8[4096]{0}', space=vmem, size = 0x1000, scoped, tag = 'input window, operand 0, single buffered']
    #allocation4 [shape = 's32[1]{0}', space=sflag, size = 0x4, scoped, tag = 'scoped memory for tpu_custom_call.1']
    #allocation5 [shape = 's32[1]{0}', space=sflag, size = 0x4, scoped, tag = 'scoped memory for tpu_custom_call.1']
    #allocation6 [shape = 'u8[8192]{0}', space=vmem, size = 0x2000, scoped, tag = 'input window, operand 1, single buffered']
    #allocation7 [shape = 's32[1]{0}', space=sflag, size = 0x4, scoped, tag = 'scoped memory for tpu_custom_call.1']
    #allocation8 [shape = 'u8[512]{0}', space=vmem, size = 0x400, scoped, tag = 'output window, operand 0, single buffered']
    %11 = vsyncpa [#allocation4], 0
    %12 = vsyncpa [#allocation7], 0
    %13 = vsyncpa [#allocation5], 0
    // Predicated region
    $region2: #{tpu_custom_call.1} parent=1 // pred_check
      _
    $region3: #{tpu_custom_call.1} parent=1 // pred_check_branch
      %15 = sbr.rel (0) target = $region5
    $region4: #{tpu_custom_call.1} parent=1 // pred_region
      %s17 = ssub.s32 128, 128
      %18 = vsyncadd [#allocation4], %s17
      %s20 = sshll.u32 [#allocation3], 4
      %s21 = int_to_ptr.vmem [resolvable:$true] %s20
      %23 = dma.hbm_to_vmem [thread:$0]  %s0, 128, %s21, [#allocation4]
    $region5: #{tpu_custom_call.1} parent=1 // pred_fallthru
      _
    // Predicated region
    $region6: #{tpu_custom_call.1} parent=1 // pred_check
      _
    $region7: #{tpu_custom_call.1} parent=1 // pred_check_branch
      %25 = sbr.rel (0) target = $region9
    $region8: #{tpu_custom_call.1} parent=1 // pred_region
      %s27 = ssub.s32 256, 256
      %28 = vsyncadd [#allocation7], %s27
      %s29 = sshll.u32 [#allocation6], 4
      %s30 = int_to_ptr.vmem [resolvable:$true] %s29
      %35 = dma.hbm_to_vmem [thread:$0]  %s1, 256, %s30, [#allocation7], 128, 128, 8
    $region9: #{tpu_custom_call.1} parent=1 // pred_fallthru
      _
    // Predicated region
    $region10: #{tpu_custom_call.1} parent=1 // pred_check
      _
    $region11: #{tpu_custom_call.1} parent=1 // pred_check_branch
      %37 = sbr.rel (0) target = $region13
    $region12: #{tpu_custom_call.1} parent=1 // pred_region
      _
    $region13: #{tpu_custom_call.1} parent=1 // pred_fallthru
      _
    // Predicated region
    $region14: #{tpu_custom_call.1} parent=1 // pred_check
      _
    $region15: #{tpu_custom_call.1} parent=1 // pred_check_branch
      %39 = sbr.rel (0) target = $region17
    $region16: #{tpu_custom_call.1} parent=1 // pred_region
      _
    $region17: #{tpu_custom_call.1} parent=1 // pred_fallthru
      _
    // Predicated region
    $region18: #{tpu_custom_call.1} parent=1 // pred_check
      _
    $region19: #{tpu_custom_call.1} parent=1 // pred_check_branch
      %41 = sbr.rel (0) target = $region21
    $region20: #{tpu_custom_call.1} parent=1 // pred_region
      _
    $region21: #{tpu_custom_call.1} parent=1 // pred_fallthru
      _
    // Predicated region
    $region22: #{tpu_custom_call.1} parent=1 // pred_check
      _
    $region23: #{tpu_custom_call.1} parent=1 // pred_check_branch
      %43 = sbr.rel (0) target = $region25
    $region24: #{tpu_custom_call.1} parent=1 // pred_region
      %44 = dma.done [#allocation4], 128
    $region25: #{tpu_custom_call.1} parent=1 // pred_fallthru
      _
    // Predicated region
    $region26: #{tpu_custom_call.1} parent=1 // pred_check
      _
    $region27: #{tpu_custom_call.1} parent=1 // pred_check_branch
      %46 = sbr.rel (0) target = $region29
    $region28: #{tpu_custom_call.1} parent=1 // pred_region
      %47 = dma.done [#allocation7], 256
    $region29: #{tpu_custom_call.1} parent=1 // pred_fallthru
      _
    %v48 = vld [vmem:[#allocation3] sm:$0xff]
    %v49 = vld [vmem:[#allocation6] sm:$0xff]
    %v50 = vld [vmem:[#allocation6 + $0x8] sm:$0xff]
    %v51 = vld [vmem:[%s2] sm:$0x1]
    %v53 = vlaneseq
    %v54 = vshrl.u32 %v53, 7
    %v55 = vsub.s32 0, %v54
    %v56 = vrot.slane %v51, %v55
    %vm58 = vcmask 130048
    %v60 = vsel %vm58, %v48, 0
    %62 = vmatprep.subr.mxu0 0.0
    %63 = vmatpush1.msra.mxu0 %v49
    %64 = vmatprep.subr.mxu0 0.0
    %65 = vmatpush1.msra.mxu0 %v50
    %66 = vmatprep.subr.mxu0 0.0
    %67 = vmatpush1.msra.mxu0 0.0
    %68 = vmatprep.subr.mxu0 0.0
    %69 = vmatpush1.msra.mxu0 0.0
    %70 = vmatprep.subr.mxu0 0.0
    %71 = vmatpush1.msra.mxu0 0.0
    %72 = vmatprep.subr.mxu0 0.0
    %73 = vmatpush1.msra.mxu0 0.0
    %74 = vmatprep.subr.mxu0 0.0
    %75 = vmatpush1.msra.mxu0 0.0
    %76 = vmatprep.subr.mxu0 0.0
    %77 = vmatpush1.msra.mxu0 0.0
    %78 = vmatprep.subr.mxu0 0.0
    %79 = vmatpush1.msra.mxu0 0.0
    %80 = vmatprep.subr.mxu0 0.0
    %81 = vmatpush1.msra.mxu0 0.0
    %82 = vmatprep.subr.mxu0 0.0
    %83 = vmatpush1.msra.mxu0 0.0
    %84 = vmatprep.subr.mxu0 0.0
    %85 = vmatpush1.msra.mxu0 0.0
    %86 = vmatprep.subr.mxu0 0.0
    %87 = vmatpush1.msra.mxu0 0.0
    %88 = vmatprep.subr.mxu0 0.0
    %89 = vmatpush1.msra.mxu0 0.0
    %90 = vmatprep.subr.mxu0 0.0
    %91 = vmatpush1.msra.mxu0 0.0
    %92 = vmatprep.subr.mxu0 0.0
    %93 = vmatpush1.msra.mxu0 0.0
    %94 = vmatprep.subr.mxu0 0.0
    %95 = vmatpush1.msra.mxu0 0.0
    %96 = vmatprep.subr.mxu0 0.0
    %97 = vmatpush1.msra.mxu0 0.0
    %98 = vmatprep.subr.mxu0 0.0
    %99 = vmatpush1.msra.mxu0 0.0
    %100 = vmatprep.subr.mxu0 0.0
    %101 = vmatpush1.msra.mxu0 0.0
    %102 = vmatprep.subr.mxu0 0.0
    %103 = vmatpush1.msra.mxu0 0.0
    %104 = vmatprep.subr.mxu0 0.0
    %105 = vmatpush1.msra.mxu0 0.0
    %106 = vmatprep.subr.mxu0 0.0
    %107 = vmatpush1.msra.mxu0 0.0
    %108 = vmatprep.subr.mxu0 0.0
    %109 = vmatpush1.msra.mxu0 0.0
    %110 = vmatprep.subr.mxu0 0.0
    %111 = vmatpush1.msra.mxu0 0.0
    %112 = vmatprep.subr.mxu0 0.0
    %113 = vmatpush1.msra.mxu0 0.0
    %114 = vmatprep.subr.mxu0 0.0
    %115 = vmatpush1.msra.mxu0 0.0
    %116 = vmatprep.subr.mxu0 0.0
    %117 = vmatpush1.msra.mxu0 0.0
    %118 = vmatprep.subr.mxu0 0.0
    %119 = vmatpush1.msra.mxu0 0.0
    %120 = vmatprep.subr.mxu0 0.0
    %121 = vmatpush1.msra.mxu0 0.0
    %122 = vmatprep.subr.mxu0 0.0
    %123 = vmatpush1.msra.mxu0 0.0
    %124 = vmatprep.subr.mxu0 0.0
    %125 = vmatpush1.msra.mxu0 0.0
    %126 = vmatprep.mubr.f32.mxu0 0.0
    %127 = vmatmul.mubr.f32.gmra.mrb[0].mxu0 %v60
    %v128 = vpop.f32.mrb[0].mxu0
    %v129 = vadd.f32 %v56, %v128
    %v130 = vpop.f32.mrb[0].mxu0
    %131 = vdwg.mxu0
    %v132 = vmax.f32 %v129, 0.0
    %v133 = vld [vmem:[%s3] sm:$0x1]
    %s134 = sld [smem:[#allocation2]]
    %v135 = vstv %s134
    %vm136 = vcmask 261120
    %v138 = vsel %vm136, %v133, 0
    %v141 = vsel %vm136, %v132, 0
    %143 = vmatprep.subr.mxu0 0.0
    %144 = vmatpush1.xpose.msra.mxu0 %v141
    %145 = vmatprep.subr.mxu0 0.0
    %146 = vmatpush1.xpose.msra.mxu0 0.0
    %147 = vmatprep.subr.mxu0 0.0
    %148 = vmatpush1.xpose.msra.mxu0 0.0
    %149 = vmatprep.subr.mxu0 0.0
    %150 = vmatpush1.xpose.msra.mxu0 0.0
    %151 = vmatprep.subr.mxu0 0.0
    %152 = vmatpush1.xpose.msra.mxu0 0.0
    %153 = vmatprep.subr.mxu0 0.0
    %154 = vmatpush1.xpose.msra.mxu0 0.0
    %155 = vmatprep.subr.mxu0 0.0
    %156 = vmatpush1.xpose.msra.mxu0 0.0
    %157 = vmatprep.subr.mxu0 0.0
    %158 = vmatpush1.xpose.msra.mxu0 0.0
    %159 = vmatprep.subr.mxu0 0.0
    %160 = vmatpush1.xpose.msra.mxu0 0.0
    %161 = vmatprep.subr.mxu0 0.0
    %162 = vmatpush1.xpose.msra.mxu0 0.0
    %163 = vmatprep.subr.mxu0 0.0
    %164 = vmatpush1.xpose.msra.mxu0 0.0
    %165 = vmatprep.subr.mxu0 0.0
    %166 = vmatpush1.xpose.msra.mxu0 0.0
    %167 = vmatprep.subr.mxu0 0.0
    %168 = vmatpush1.xpose.msra.mxu0 0.0
    %169 = vmatprep.subr.mxu0 0.0
    %170 = vmatpush1.xpose.msra.mxu0 0.0
    %171 = vmatprep.subr.mxu0 0.0
    %172 = vmatpush1.xpose.msra.mxu0 0.0
    %173 = vmatprep.subr.mxu0 0.0
    %174 = vmatpush1.xpose.msra.mxu0 0.0
    %175 = vmatprep.subr.mxu0 0.0
    %176 = vmatpush1.xpose.msra.mxu0 0.0
    %177 = vmatprep.subr.mxu0 0.0
    %178 = vmatpush1.xpose.msra.mxu0 0.0
    %179 = vmatprep.subr.mxu0 0.0
    %180 = vmatpush1.xpose.msra.mxu0 0.0
    %181 = vmatprep.subr.mxu0 0.0
    %182 = vmatpush1.xpose.msra.mxu0 0.0
    %183 = vmatprep.subr.mxu0 0.0
    %184 = vmatpush1.xpose.msra.mxu0 0.0
    %185 = vmatprep.subr.mxu0 0.0
    %186 = vmatpush1.xpose.msra.mxu0 0.0
    %187 = vmatprep.subr.mxu0 0.0
    %188 = vmatpush1.xpose.msra.mxu0 0.0
    %189 = vmatprep.subr.mxu0 0.0
    %190 = vmatpush1.xpose.msra.mxu0 0.0
    %191 = vmatprep.subr.mxu0 0.0
    %192 = vmatpush1.xpose.msra.mxu0 0.0
    %193 = vmatprep.subr.mxu0 0.0
    %194 = vmatpush1.xpose.msra.mxu0 0.0
    %195 = vmatprep.subr.mxu0 0.0
    %196 = vmatpush1.xpose.msra.mxu0 0.0
    %197 = vmatprep.subr.mxu0 0.0
    %198 = vmatpush1.xpose.msra.mxu0 0.0
    %199 = vmatprep.subr.mxu0 0.0
    %200 = vmatpush1.xpose.msra.mxu0 0.0
    %201 = vmatprep.subr.mxu0 0.0
    %202 = vmatpush1.xpose.msra.mxu0 0.0
    %203 = vmatprep.subr.mxu0 0.0
    %204 = vmatpush1.xpose.msra.mxu0 0.0
    %205 = vmatprep.subr.mxu0 0.0
    %206 = vmatpush1.xpose.msra.mxu0 0.0
    %207 = vmatprep.mubr.f32.mxu0 0.0
    %208 = vmatmul.mubr.f32.gmra.mrb[0].mxu0 %v138
    %v209 = vpop.f32.mrb[0].mxu0
    %v210 = vadd.f32 %v135, %v209
    %v211 = vpop.f32.mrb[0].mxu0
    %212 = vdwg.mxu0
    %vm213 = vcmask 57344
    %214 = vst.msk [vmem:[#allocation8] sm:$0x1] %vm213, %v210
    // Predicated region
    $region30: #{tpu_custom_call.1} parent=1 // pred_check
      _
    $region31: #{tpu_custom_call.1} parent=1 // pred_check_branch
      %216 = sbr.rel (0) target = $region33
    $region32: #{tpu_custom_call.1} parent=1 // pred_region
      %s218 = ssub.s32 16, 16
      %219 = vsyncadd [#allocation5], %s218
      %s221 = sshll.u32 [#allocation8], 4
      %s222 = int_to_ptr.vmem [resolvable:$true] %s221
      %224 = dma.vmem_to_hbm [thread:$0]  %s222, 16, %s5, [#allocation5]
    $region33: #{tpu_custom_call.1} parent=1 // pred_fallthru
      _
    // Predicated region
    $region34: #{tpu_custom_call.1} parent=1 // pred_check
      _
    $region35: #{tpu_custom_call.1} parent=1 // pred_check_branch
      %226 = sbr.rel (0) target = $region37
    $region36: #{tpu_custom_call.1} parent=1 // pred_region
      %227 = dma.done [#allocation5], 16
    $region37: #{tpu_custom_call.1} parent=1 // pred_fallthru
      _
    %228 = vsyncpa [#allocation4], 1
    %229 = vsyncpa [#allocation7], 1
    %230 = vsyncpa [#allocation5], 1

// kernel: tpu_custom_call.1
$region0: #{tpu_custom_call.1}
  #allocation0 [shape = 'u32[]', space=smem, size = 0x4, offset = 0x4, fixed_abs, tag = 'smem constant byte address 0x4 - core index']
  #allocation1 [shape = 'u32[144,128]{1,0:T(1,128)}', space=vmem, size = 0x12000, scoped, tag = 'internal scratch']
  #allocation2 [shape = 'f32[1,1]{1,0:T(1,128)S(6)}', space=smem, size = 0x200, scoped, tag = 'scoped memory for tpu_custom_call.1']
  %s0 = inlined_call_operand.hbm [shape: f32[8,16], index: 0, kind: input, shape index: {}]
  %s1 = inlined_call_operand.hbm [shape: f32[16,32], index: 1, kind: input, shape index: {}]
  %s2 = inlined_call_operand.vmem [shape: f32[1,32], index: 2, kind: input, shape index: {}]
  %s3 = inlined_call_operand.vmem [shape: f32[1,32], index: 3, kind: input, shape index: {}]
  %s4 = inlined_call_operand.<no memory space> [shape: f32[1,1], index: 4, kind: input, shape index: {}]
  %s5 = inlined_call_operand.hbm [shape: f32[1,8], index: 5, kind: output, shape index: {}]
  %s6 = sld [smem:[#allocation0]]
  $region38: #{tpu_custom_call.1} parent=0
    _
  %s8 = ssub.s32 1, %s6
  %s9 = scalar_select 0, %s8, %s6
  %10 = sst [smem:[#allocation2]] %s4
  $region1: #{tpu_custom_call.1} parent=0
    #allocation3 [shape = 'u8[4096]{0}', space=vmem, size = 0x1000, scoped, tag = 'input window, operand 0, single buffered']
    #allocation4 [shape = 's32[1]{0}', space=sflag, size = 0x4, scoped, tag = 'scoped memory for tpu_custom_call.1']
    #allocation5 [shape = 's32[1]{0}', space=sflag, size = 0x4, scoped, tag = 'scoped memory for tpu_custom_call.1']
    #allocation6 [shape = 'u8[8192]{0}', space=vmem, size = 0x2000, scoped, tag = 'input window, operand 1, single buffered']
    #allocation7 [shape = 's32[1]{0}', space=sflag, size = 0x4, scoped, tag = 'scoped memory for tpu_custom_call.1']
    #allocation8 [shape = 'u8[512]{0}', space=vmem, size = 0x400, scoped, tag = 'output window, operand 0, single buffered']
    %11 = vsyncpa [#allocation4], 0
    %12 = vsyncpa [#allocation7], 0
    %13 = vsyncpa [#allocation5], 0
    // Predicated region
    $region2: #{tpu_custom_call.1} parent=1 // pred_check
      _
    $region3: #{tpu_custom_call.1} parent=1 // pred_check_branch
      %15 = sbr.rel (0) target = $region5
    $region4: #{tpu_custom_call.1} parent=1 // pred_region
      %s17 = ssub.s32 128, 128
      %18 = vsyncadd [#allocation4], %s17
      %s20 = sshll.u32 [#allocation3], 4
      %s21 = int_to_ptr.vmem [resolvable:$true] %s20
      %23 = dma.hbm_to_vmem [thread:$0]  %s0, 128, %s21, [#allocation4]
    $region5: #{tpu_custom_call.1} parent=1 // pred_fallthru
      _
    // Predicated region
    $region6: #{tpu_custom_call.1} parent=1 // pred_check
      _
    $region7: #{tpu_custom_call.1} parent=1 // pred_check_branch
      %25 = sbr.rel (0) target = $region9
    $region8: #{tpu_custom_call.1} parent=1 // pred_region
      %s27 = ssub.s32 256, 256
      %28 = vsyncadd [#allocation7], %s27
      %s29 = sshll.u32 [#allocation6], 4
      %s30 = int_to_ptr.vmem [resolvable:$true] %s29
      %35 = dma.hbm_to_vmem [thread:$0]  %s1, 256, %s30, [#allocation7], 128, 128, 8
    $region9: #{tpu_custom_call.1} parent=1 // pred_fallthru
      _
    // Predicated region
    $region10: #{tpu_custom_call.1} parent=1 // pred_check
      _
    $region11: #{tpu_custom_call.1} parent=1 // pred_check_branch
      %37 = sbr.rel (0) target = $region13
    $region12: #{tpu_custom_call.1} parent=1 // pred_region
      _
    $region13: #{tpu_custom_call.1} parent=1 // pred_fallthru
      _
    // Predicated region
    $region14: #{tpu_custom_call.1} parent=1 // pred_check
      _
    $region15: #{tpu_custom_call.1} parent=1 // pred_check_branch
      %39 = sbr.rel (0) target = $region17
    $region16: #{tpu_custom_call.1} parent=1 // pred_region
      _
    $region17: #{tpu_custom_call.1} parent=1 // pred_fallthru
      _
    // Predicated region
    $region18: #{tpu_custom_call.1} parent=1 // pred_check
      _
    $region19: #{tpu_custom_call.1} parent=1 // pred_check_branch
      %41 = sbr.rel (0) target = $region21
    $region20: #{tpu_custom_call.1} parent=1 // pred_region
      _
    $region21: #{tpu_custom_call.1} parent=1 // pred_fallthru
      _
    // Predicated region
    $region22: #{tpu_custom_call.1} parent=1 // pred_check
      _
    $region23: #{tpu_custom_call.1} parent=1 // pred_check_branch
      %43 = sbr.rel (0) target = $region25
    $region24: #{tpu_custom_call.1} parent=1 // pred_region
      %44 = dma.done [#allocation4], 128
    $region25: #{tpu_custom_call.1} parent=1 // pred_fallthru
      _
    // Predicated region
    $region26: #{tpu_custom_call.1} parent=1 // pred_check
      _
    $region27: #{tpu_custom_call.1} parent=1 // pred_check_branch
      %46 = sbr.rel (0) target = $region29
    $region28: #{tpu_custom_call.1} parent=1 // pred_region
      %47 = dma.done [#allocation7], 256
    $region29: #{tpu_custom_call.1} parent=1 // pred_fallthru
      _
    %v48 = vld [vmem:[#allocation3] sm:$0xff]
    %v49 = vld [vmem:[#allocation6] sm:$0xff]
    %v50 = vld [vmem:[#allocation6 + $0x8] sm:$0xff]
    %v51 = vld [vmem:[%s2] sm:$0x1]
    %v53 = vlaneseq
    %v54 = vshrl.u32 %v53, 7
    %v55 = vsub.s32 0, %v54
    %v56 = vrot.slane %v51, %v55
    %vm58 = vcmask 130048
    %v60 = vsel %vm58, %v48, 0
    %62 = vmatprep.subr.mxu0 0.0
    %63 = vmatpush1.msra.mxu0 %v49
    %64 = vmatprep.subr.mxu0 0.0
    %65 = vmatpush1.msra.mxu0 %v50
    %66 = vmatprep.subr.mxu0 0.0
    %67 = vmatpush1.msra.mxu0 0.0
    %68 = vmatprep.subr.mxu0 0.0
    %69 = vmatpush1.msra.mxu0 0.0
    %70 = vmatprep.subr.mxu0 0.0
    %71 = vmatpush1.msra.mxu0 0.0
    %72 = vmatprep.subr.mxu0 0.0
    %73 = vmatpush1.msra.mxu0 0.0
    %74 = vmatprep.subr.mxu0 0.0
    %75 = vmatpush1.msra.mxu0 0.0
    %76 = vmatprep.subr.mxu0 0.0
    %77 = vmatpush1.msra.mxu0 0.0
    %78 = vmatprep.subr.mxu0 0.0
    %79 = vmatpush1.msra.mxu0 0.0
    %80 = vmatprep.subr.mxu0 0.0
    %81 = vmatpush1.msra.mxu0 0.0
    %82 = vmatprep.subr.mxu0 0.0
    %83 = vmatpush1.msra.mxu0 0.0
    %84 = vmatprep.subr.mxu0 0.0
    %85 = vmatpush1.msra.mxu0 0.0
    %86 = vmatprep.subr.mxu0 0.0
    %87 = vmatpush1.msra.mxu0 0.0
    %88 = vmatprep.subr.mxu0 0.0
    %89 = vmatpush1.msra.mxu0 0.0
    %90 = vmatprep.subr.mxu0 0.0
    %91 = vmatpush1.msra.mxu0 0.0
    %92 = vmatprep.subr.mxu0 0.0
    %93 = vmatpush1.msra.mxu0 0.0
    %94 = vmatprep.subr.mxu0 0.0
    %95 = vmatpush1.msra.mxu0 0.0
    %96 = vmatprep.subr.mxu0 0.0
    %97 = vmatpush1.msra.mxu0 0.0
    %98 = vmatprep.subr.mxu0 0.0
    %99 = vmatpush1.msra.mxu0 0.0
    %100 = vmatprep.subr.mxu0 0.0
    %101 = vmatpush1.msra.mxu0 0.0
    %102 = vmatprep.subr.mxu0 0.0
    %103 = vmatpush1.msra.mxu0 0.0
    %104 = vmatprep.subr.mxu0 0.0
    %105 = vmatpush1.msra.mxu0 0.0
    %106 = vmatprep.subr.mxu0 0.0
    %107 = vmatpush1.msra.mxu0 0.0
    %108 = vmatprep.subr.mxu0 0.0
    %109 = vmatpush1.msra.mxu0 0.0
    %110 = vmatprep.subr.mxu0 0.0
    %111 = vmatpush1.msra.mxu0 0.0
    %112 = vmatprep.subr.mxu0 0.0
    %113 = vmatpush1.msra.mxu0 0.0
    %114 = vmatprep.subr.mxu0 0.0
    %115 = vmatpush1.msra.mxu0 0.0
    %116 = vmatprep.subr.mxu0 0.0
    %117 = vmatpush1.msra.mxu0 0.0
    %118 = vmatprep.subr.mxu0 0.0
    %119 = vmatpush1.msra.mxu0 0.0
    %120 = vmatprep.subr.mxu0 0.0
    %121 = vmatpush1.msra.mxu0 0.0
    %122 = vmatprep.subr.mxu0 0.0
    %123 = vmatpush1.msra.mxu0 0.0
    %124 = vmatprep.subr.mxu0 0.0
    %125 = vmatpush1.msra.mxu0 0.0
    %126 = vmatprep.mubr.f32.mxu0 0.0
    %127 = vmatmul.mubr.f32.gmra.mrb[0].mxu0 %v60
    %v128 = vpop.f32.mrb[0].mxu0
    %v129 = vadd.f32 %v56, %v128
    %v130 = vpop.f32.mrb[0].mxu0
    %131 = vdwg.mxu0
    %v132 = vmax.f32 %v129, 0.0
    %v133 = vld [vmem:[%s3] sm:$0x1]
    %s134 = sld [smem:[#allocation2]]
    %v135 = vstv %s134
    %vm136 = vcmask 261120
    %v138 = vsel %vm136, %v133, 0
    %v141 = vsel %vm136, %v132, 0
    %143 = vmatprep.subr.mxu0 0.0
    %144 = vmatpush1.xpose.msra.mxu0 %v141
    %145 = vmatprep.subr.mxu0 0.0
    %146 = vmatpush1.xpose.msra.mxu0 0.0
    %147 = vmatprep.subr.mxu0 0.0
    %148 = vmatpush1.xpose.msra.mxu0 0.0
    %149 = vmatprep.subr.mxu0 0.0
    %150 = vmatpush1.xpose.msra.mxu0 0.0
    %151 = vmatprep.subr.mxu0 0.0
    %152 = vmatpush1.xpose.msra.mxu0 0.0
    %153 = vmatprep.subr.mxu0 0.0
    %154 = vmatpush1.xpose.msra.mxu0 0.0
    %155 = vmatprep.subr.mxu0 0.0
    %156 = vmatpush1.xpose.msra.mxu0 0.0
    %157 = vmatprep.subr.mxu0 0.0
    %158 = vmatpush1.xpose.msra.mxu0 0.0
    %159 = vmatprep.subr.mxu0 0.0
    %160 = vmatpush1.xpose.msra.mxu0 0.0
    %161 = vmatprep.subr.mxu0 0.0
    %162 = vmatpush1.xpose.msra.mxu0 0.0
    %163 = vmatprep.subr.mxu0 0.0
    %164 = vmatpush1.xpose.msra.mxu0 0.0
    %165 = vmatprep.subr.mxu0 0.0
    %166 = vmatpush1.xpose.msra.mxu0 0.0
    %167 = vmatprep.subr.mxu0 0.0
    %168 = vmatpush1.xpose.msra.mxu0 0.0
    %169 = vmatprep.subr.mxu0 0.0
    %170 = vmatpush1.xpose.msra.mxu0 0.0
    %171 = vmatprep.subr.mxu0 0.0
    %172 = vmatpush1.xpose.msra.mxu0 0.0
    %173 = vmatprep.subr.mxu0 0.0
    %174 = vmatpush1.xpose.msra.mxu0 0.0
    %175 = vmatprep.subr.mxu0 0.0
    %176 = vmatpush1.xpose.msra.mxu0 0.0
    %177 = vmatprep.subr.mxu0 0.0
    %178 = vmatpush1.xpose.msra.mxu0 0.0
    %179 = vmatprep.subr.mxu0 0.0
    %180 = vmatpush1.xpose.msra.mxu0 0.0
    %181 = vmatprep.subr.mxu0 0.0
    %182 = vmatpush1.xpose.msra.mxu0 0.0
    %183 = vmatprep.subr.mxu0 0.0
    %184 = vmatpush1.xpose.msra.mxu0 0.0
    %185 = vmatprep.subr.mxu0 0.0
    %186 = vmatpush1.xpose.msra.mxu0 0.0
    %187 = vmatprep.subr.mxu0 0.0
    %188 = vmatpush1.xpose.msra.mxu0 0.0
    %189 = vmatprep.subr.mxu0 0.0
    %190 = vmatpush1.xpose.msra.mxu0 0.0
    %191 = vmatprep.subr.mxu0 0.0
    %192 = vmatpush1.xpose.msra.mxu0 0.0
    %193 = vmatprep.subr.mxu0 0.0
    %194 = vmatpush1.xpose.msra.mxu0 0.0
    %195 = vmatprep.subr.mxu0 0.0
    %196 = vmatpush1.xpose.msra.mxu0 0.0
    %197 = vmatprep.subr.mxu0 0.0
    %198 = vmatpush1.xpose.msra.mxu0 0.0
    %199 = vmatprep.subr.mxu0 0.0
    %200 = vmatpush1.xpose.msra.mxu0 0.0
    %201 = vmatprep.subr.mxu0 0.0
    %202 = vmatpush1.xpose.msra.mxu0 0.0
    %203 = vmatprep.subr.mxu0 0.0
    %204 = vmatpush1.xpose.msra.mxu0 0.0
    %205 = vmatprep.subr.mxu0 0.0
    %206 = vmatpush1.xpose.msra.mxu0 0.0
    %207 = vmatprep.mubr.f32.mxu0 0.0
    %208 = vmatmul.mubr.f32.gmra.mrb[0].mxu0 %v138
    %v209 = vpop.f32.mrb[0].mxu0
    %v210 = vadd.f32 %v135, %v209
    %v211 = vpop.f32.mrb[0].mxu0
    %212 = vdwg.mxu0
    %vm213 = vcmask 57344
    %214 = vst.msk [vmem:[#allocation8] sm:$0x1] %vm213, %v210
    // Predicated region
    $region30: #{tpu_custom_call.1} parent=1 // pred_check
      _
    $region31: #{tpu_custom_call.1} parent=1 // pred_check_branch
      %216 = sbr.rel (0) target = $region33
    $region32: #{tpu_custom_call.1} parent=1 // pred_region
      %s218 = ssub.s32 16, 16
      %219 = vsyncadd [#allocation5], %s218
      %s221 = sshll.u32 [#allocation8], 4
      %s222 = int_to_ptr.vmem [resolvable:$true] %s221
      %224 = dma.vmem_to_hbm [thread:$0]  %s222, 16, %s5, [#allocation5]
    $region33: #{tpu_custom_call.1} parent=1 // pred_fallthru
      _
    // Predicated region
    $region34: #{tpu_custom_call.1} parent=1 // pred_check
      _
    $region35: #{tpu_custom_call.1} parent=1 // pred_check_branch
      %226 = sbr.rel (0) target = $region37
    $region36: #{tpu_custom_call.1} parent=1 // pred_region
      %227 = dma.done [#allocation5], 16
    $region37: #{tpu_custom_call.1} parent=1 // pred_fallthru
      _
    %228 = vsyncpa [#allocation4], 1
    %229 = vsyncpa [#allocation7], 1
    %230 = vsyncpa [#allocation5], 1

</llo_original>
